<compile_context>
chip_gen: v7x
topology: tpu7x:2x2x1
jax: 0.10.0
libtpu: 0.0.40
codegen_flags: <defaults>
</compile_context>

<pallas_src>
import functools
import math

import jax
import jax.numpy as jnp
import numpy as np
from jax.experimental import pallas as pl
from jax.experimental.pallas import tpu as pltpu


_MASK_VALUE = -1e30  # large finite negative; avoids (-inf) - (-inf) = NaN


def _round_up(x, m):
    return ((x + m - 1) // m) * m


# --------------------------- small fused path --------------------------------
def _sdpa_small_kernel(q_ref, k_ref, v_ref, o_ref, *, inv_temp, mxu_dtype):
    # Whole problem resident in VMEM: batch folded into the block.
    q = (q_ref[...] * inv_temp).astype(mxu_dtype)        # (B, Lq, D)
    k = k_ref[...].astype(mxu_dtype)                     # (B, D, Lk)
    v = v_ref[...].astype(mxu_dtype)                     # (B, Lk, D)
    s = jnp.einsum("bqd,bdk->bqk", q, k,
                   preferred_element_type=jnp.float32)   # (B, Lq, Lk) f32
    m = s.max(axis=-1, keepdims=True)
    p = jnp.exp(s - m)
    l = p.sum(axis=-1, keepdims=True)
    o = jnp.einsum("bqk,bkd->bqd", p.astype(mxu_dtype), v,
                   preferred_element_type=jnp.float32)
    o_ref[...] = (o * pl.reciprocal(l, approx=True)).astype(o_ref.dtype)


# --------------------------- tiled flash path ---------------------------------
def _sdpa_kernel(q_ref, k_ref, v_ref, o_ref, m_sc, l_sc, acc_sc,
                 *, inv_temp, kv_len, block_k, needs_mask, mxu_dtype):
    # q_ref: (1, TQ, D)  k_ref: (1, D, TK)  v_ref: (1, TK, D)  o_ref: (1, TQ, D)
    # scratch: m_sc/l_sc (TQ, 128) f32 lane-replicated, acc_sc (TQ, D) f32.
    ki = pl.program_id(2)

    @pl.when(ki == 0)
    def _init():
        m_sc[...] = jnp.full(m_sc.shape, -jnp.inf, dtype=m_sc.dtype)
        l_sc[...] = jnp.zeros(l_sc.shape, dtype=l_sc.dtype)
        acc_sc[...] = jnp.zeros(acc_sc.shape, dtype=acc_sc.dtype)

    # Pre-scale q (matches (q/temp)@k rounding order; TQ*D mults, not TQ*TK).
    # Cast to the MXU-fast dtype (bf16 for f32 inputs); accumulate in f32.
    q = (q_ref[0] * inv_temp).astype(mxu_dtype)          # (TQ, D)
    k = k_ref[0].astype(mxu_dtype)                       # (D, TK)
    v = v_ref[0].astype(mxu_dtype)                       # (TK, D)

    s = jnp.dot(q, k, preferred_element_type=jnp.float32)   # (TQ, TK) f32

    if needs_mask:
        # Only the last kv tile contains padded key columns; keep the fully
        # valid tiles mask-free (saves iota+cmp+select over TQ*TK per step).
        def _mask(s_):
            col = ki * block_k + jax.lax.broadcasted_iota(jnp.int32, s_.shape, 1)
            return jnp.where(col < kv_len, s_, _MASK_VALUE)
        s = jax.lax.cond(ki == pl.num_programs(2) - 1, _mask, lambda s_: s_, s)

    # Online softmax update (m/l scratch lane-replicated -> lane-dense math).
    m_prev = m_sc[...]                                           # (TQ, 128)
    m_next = jnp.maximum(m_prev, s.max(axis=-1, keepdims=True))  # (TQ, 128)
    alpha = jnp.exp(m_prev - m_next)                             # (TQ, 128)
    p = jnp.exp(s - m_next[:, :1])                               # (TQ, TK)

    l_sc[...] = alpha * l_sc[...] + p.sum(axis=-1, keepdims=True)
    acc_sc[...] = alpha[:, :1] * acc_sc[...] + jnp.dot(
        p.astype(mxu_dtype), v, preferred_element_type=jnp.float32)
    m_sc[...] = m_next

    @pl.when(ki == pl.num_programs(2) - 1)
    def _finalize():
        inv_l = pl.reciprocal(l_sc[...], approx=True)            # EUP slot
        o_ref[0] = (acc_sc[...] * inv_l[:, :1]).astype(o_ref.dtype)


def scaled_dot_product_attention(q, k, v, temperature, *,
                                 block_q=256, block_k=512):
    """Matches the PyTorch module's forward (eval mode).

    q: (B, Lq, D)
    k: (B, D, Lk)   -- NOTE: pre-transposed layout, as in torch.matmul(q/temp, k)
    v: (B, Lk, D)
    returns (B, Lq, D)
    """
    B, Lq, D = q.shape
    Bk, Dk, Lk = k.shape
    Bv, Lv, Dv = v.shape
    assert (Bk, Dk) == (B, D), "k must have shape (B, D, Lk)"
    assert (Bv, Lv, Dv) == (B, Lk, D), "v must have shape (B, Lk, D)"
    # TODO(synk): for production D < 128, fold attention heads into the last
    # dim so the output store / MXU contraction are lane-dense.

    inv_temp = float(1.0 / temperature)
    mxu_dtype = jnp.bfloat16 if q.dtype == jnp.float32 else q.dtype
    itemsize = np.dtype(q.dtype).itemsize

    # ---- tiny problems: one fused VMEM-resident kernel call (no grid). ------
    small_vmem = itemsize * (2 * q.size + k.size + v.size) + 4 * B * Lq * Lk
    if Lq <= block_q and Lk <= block_k and small_vmem <= (2 << 20):
        kernel = functools.partial(_sdpa_small_kernel,
                                   inv_temp=inv_temp, mxu_dtype=mxu_dtype)
        return pl.pallas_call(
            kernel,
            out_shape=jax.ShapeDtypeStruct((B, Lq, D), q.dtype),
            cost_estimate=pl.CostEstimate(
                flops=4 * B * Lq * Lk * D,
                transcendentals=B * Lq * Lk,
                bytes_accessed=itemsize * (2 * q.size + k.size + v.size)),
        )(q, k, v)

    # ---- tiled flash-attention path. ----------------------------------------
    if Lq <= block_q:
        TQ, Lq_pad = Lq, Lq
    else:
        TQ = block_q
        Lq_pad = _round_up(Lq, TQ)
    if Lk <= block_k:
        TK, Lk_pad = Lk, Lk
    else:
        TK = block_k
        Lk_pad = _round_up(Lk, TK)
    needs_mask = Lk_pad != Lk

    # v7x has 2 TensorCores: expose >= 2 slices along the parallel grid axes.
    if B * (Lq_pad // TQ) < 2 and Lq >= 16:
        TQ = _round_up((Lq + 1) // 2, 8)
        Lq_pad = 2 * TQ

    if Lq_pad != Lq:
        q = jnp.pad(q, ((0, 0), (0, Lq_pad - Lq), (0, 0)))
    if Lk_pad != Lk:
        k = jnp.pad(k, ((0, 0), (0, 0), (0, Lk_pad - Lk)))
        v = jnp.pad(v, ((0, 0), (0, Lk_pad - Lk), (0, 0)))

    grid = (B, Lq_pad // TQ, Lk_pad // TK)

    kernel = functools.partial(
        _sdpa_kernel,
        inv_temp=inv_temp,
        kv_len=Lk,
        block_k=TK,
        needs_mask=needs_mask,
        mxu_dtype=mxu_dtype,
    )

    n_q_passes = Lq_pad // TQ
    flops = 4 * B * Lq_pad * Lk_pad * D      # two matmuls
    bytes_accessed = itemsize * (q.size + B * Lq_pad * D
                                 + n_q_passes * (k.size + v.size))

    out = pl.pallas_call(
        kernel,
        out_shape=jax.ShapeDtypeStruct((B, Lq_pad, D), q.dtype),
        grid_spec=pltpu.PrefetchScalarGridSpec(
            num_scalar_prefetch=0,
            grid=grid,
            in_specs=[
                pl.BlockSpec((1, TQ, D), lambda b, qi, ki: (b, qi, 0)),
                # TODO(synk): if profiling shows exposed K/V DMA, add
                # pipeline_mode=pl.Buffered(3) on the k/v BlockSpecs.
                pl.BlockSpec((1, D, TK), lambda b, qi, ki: (b, 0, ki)),
                pl.BlockSpec((1, TK, D), lambda b, qi, ki: (b, ki, 0)),
            ],
            out_specs=pl.BlockSpec((1, TQ, D), lambda b, qi, ki: (b, qi, 0)),
            scratch_shapes=[
                pltpu.VMEM((TQ, 128), jnp.float32),   # running max (lane-repl.)
                pltpu.VMEM((TQ, 128), jnp.float32),   # running denom (lane-repl.)
                pltpu.VMEM((TQ, D), jnp.float32),     # output accumulator
            ],
        ),
        compiler_params=pltpu.CompilerParams(
            dimension_semantics=("parallel", "parallel", "arbitrary"),
            # Actual need is ~1-2 MiB; stays well under v7x's 64 MiB physical.
            vmem_limit_bytes=48 * 1024 * 1024,
        ),
        cost_estimate=pl.CostEstimate(
            flops=flops,
            transcendentals=B * Lq_pad * Lk_pad,
            bytes_accessed=bytes_accessed,
        ),
    )(q, k, v)

    if Lq_pad != Lq:
        out = out[:, :Lq, :]
    return out


def _ref_sdpa(q, k, v, temp):
    # Exact float64 host reference matching the PyTorch eval-mode forward.
    qf = np.asarray(q, np.float64)
    kf = np.asarray(k, np.float64)
    vf = np.asarray(v, np.float64)
    s = np.matmul(qf / temp, kf)
    s = s - s.max(axis=-1, keepdims=True)
    p = np.exp(s)
    p = p / p.sum(axis=-1, keepdims=True)
    return np.matmul(p, vf)


if __name__ == "__main__":
    key = jax.random.PRNGKey(0)

    # Small config implied by the module: batch=2, seq=8, hidden=32.
    B, L, D = 2, 8, 32
    temp = math.sqrt(D)
    kq, kk, kv = jax.random.split(key, 3)
    q = jax.random.normal(kq, (B, L, D), dtype=jnp.float32)
    k = jax.random.normal(kk, (B, D, L), dtype=jnp.float32)  # (B, D, Lk) layout
    v = jax.random.normal(kv, (B, L, D), dtype=jnp.float32)

    out = jax.block_until_ready(scaled_dot_product_attention(q, k, v, temp))
    assert out.shape == (B, L, D)
    np.testing.assert_allclose(np.asarray(out, np.float64),
                               _ref_sdpa(q, k, v, temp),
                               atol=2e-2, rtol=2e-2)

    # Larger config: exercises the tiled path, q padding and final-tile masking.
    B2, Lq2, Lk2, D2 = 2, 300, 1100, 64
    temp2 = math.sqrt(D2)
    kq2, kk2, kv2 = jax.random.split(jax.random.PRNGKey(0), 3)
    q2 = jax.random.normal(kq2, (B2, Lq2, D2), dtype=jnp.float32)
    k2 = jax.random.normal(kk2, (B2, D2, Lk2), dtype=jnp.float32)
    v2 = jax.random.normal(kv2, (B2, Lk2, D2), dtype=jnp.float32)
    out2 = jax.block_until_ready(scaled_dot_product_attention(q2, k2, v2, temp2))
    assert out2.shape == (B2, Lq2, D2)
    np.testing.assert_allclose(np.asarray(out2, np.float64),
                               _ref_sdpa(q2, k2, v2, temp2),
                               atol=2e-2, rtol=2e-2)

    print("KERNEL_OK")
</pallas_src>

<mosaic_0001>
module attributes {stable_mosaic.version = 11 : i64} {
  func.func @_sdpa_small_kernel(%arg0: memref<2x8x32xf32, #tpu.memory_space<vmem>>, %arg1: memref<2x32x8xf32, #tpu.memory_space<vmem>>, %arg2: memref<2x8x32xf32, #tpu.memory_space<vmem>>, %arg3: memref<2x8x32xf32, #tpu.memory_space<vmem>>) attributes {dimension_semantics = [], scalar_prefetch = 0 : i64, scratch_operands = 0 : i64, tpu.core_type = #tpu.core_type<tc>} {
    %c0 = arith.constant 0 : index
    %c0_0 = arith.constant 0 : index
    %c0_1 = arith.constant 0 : index
    %0 = vector.load %arg0[%c0, %c0_0, %c0_1] : memref<2x8x32xf32, #tpu.memory_space<vmem>>, vector<2x8x32xf32>
    %cst = arith.constant 0.176776692 : f32
    %1 = vector.broadcast %cst : f32 to vector<2x8x32xf32>
    %2 = arith.mulf %0, %1 : vector<2x8x32xf32>
    %3 = arith.truncf %2 : vector<2x8x32xf32> to vector<2x8x32xbf16>
    %c0_2 = arith.constant 0 : index
    %c0_3 = arith.constant 0 : index
    %c0_4 = arith.constant 0 : index
    %4 = vector.load %arg1[%c0_2, %c0_3, %c0_4] : memref<2x32x8xf32, #tpu.memory_space<vmem>>, vector<2x32x8xf32>
    %5 = arith.truncf %4 : vector<2x32x8xf32> to vector<2x32x8xbf16>
    %c0_5 = arith.constant 0 : index
    %c0_6 = arith.constant 0 : index
    %c0_7 = arith.constant 0 : index
    %6 = vector.load %arg2[%c0_5, %c0_6, %c0_7] : memref<2x8x32xf32, #tpu.memory_space<vmem>>, vector<2x8x32xf32>
    %7 = arith.truncf %6 : vector<2x8x32xf32> to vector<2x8x32xbf16>
    "tpu.trace_start"() <{level = 10 : i32, message = "bqd,bdk->bqk"}> : () -> ()
    %cst_8 = arith.constant dense<0.000000e+00> : vector<2x8x8xf32>
    %8 = tpu.matmul %3, %5, %cst_8 {dimension_numbers = #tpu.dot_dimension_numbers<[2], [1], [1], [2], [0, 0, 0, 1, 1, 2], [0], [0]>} : vector<2x8x32xbf16>, vector<2x32x8xbf16>, vector<2x8x8xf32> -> vector<2x8x8xf32>
    "tpu.trace_stop"() : () -> ()
    %cst_9 = arith.constant dense<0xFF800000> : vector<2x8xf32>
    %9 = vector.multi_reduction <maximumf>, %8, %cst_9 [2] : vector<2x8x8xf32> to vector<2x8xf32>
    %10 = vector.shape_cast %9 : vector<2x8xf32> to vector<2x8x1xf32>
    %11 = vector.broadcast %10 : vector<2x8x1xf32> to vector<2x8x8xf32>
    %12 = arith.subf %8, %11 : vector<2x8x8xf32>
    %13 = math.exp %12 : vector<2x8x8xf32>
    %cst_10 = arith.constant dense<0.000000e+00> : vector<2x8xf32>
    %14 = vector.multi_reduction <add>, %13, %cst_10 [2] : vector<2x8x8xf32> to vector<2x8xf32>
    %15 = vector.shape_cast %14 : vector<2x8xf32> to vector<2x8x1xf32>
    %16 = arith.truncf %13 : vector<2x8x8xf32> to vector<2x8x8xbf16>
    "tpu.trace_start"() <{level = 10 : i32, message = "bqk,bkd->bqd"}> : () -> ()
    %cst_11 = arith.constant dense<0.000000e+00> : vector<2x8x32xf32>
    %17 = tpu.matmul %16, %7, %cst_11 {dimension_numbers = #tpu.dot_dimension_numbers<[2], [1], [1], [2], [0, 0, 0, 1, 1, 2], [0], [0]>} : vector<2x8x8xbf16>, vector<2x8x32xbf16>, vector<2x8x32xf32> -> vector<2x8x32xf32>
    "tpu.trace_stop"() : () -> ()
    %18 = tpu.reciprocal %15 {approx = true} : vector<2x8x1xf32> -> vector<2x8x1xf32>
    %19 = vector.broadcast %18 : vector<2x8x1xf32> to vector<2x8x32xf32>
    %20 = arith.mulf %17, %19 : vector<2x8x32xf32>
    %c0_12 = arith.constant 0 : index
    %c0_13 = arith.constant 0 : index
    %c0_14 = arith.constant 0 : index
    %21 = vector.load %arg3[%c0_12, %c0_13, %c0_14] : memref<2x8x32xf32, #tpu.memory_space<vmem>>, vector<2x8x32xf32>
    tpu.vector_store %arg3[%c0_12, %c0_13, %c0_14], %20 {strides = array<i32>} : memref<2x8x32xf32, #tpu.memory_space<vmem>>, vector<2x8x32xf32>,
    return
  }
}

</mosaic_0001>

<llo_original>
// kernel: tpu_custom_call.1
$region0: #{tpu_custom_call.1}
  #allocation0 [shape = 'u32[]', space=smem, size = 0x4, offset = 0x4, fixed_abs, tag = 'smem constant byte address 0x4 - core index']
  #allocation1 [shape = 'u32[144,128]{1,0:T(1,128)}', space=vmem, size = 0x12000, scoped, tag = 'internal scratch']
  %s0 = inlined_call_operand.vmem [shape: f32[2,8,32], index: 0, kind: input, shape index: {}]
  %s1 = inlined_call_operand.vmem [shape: f32[2,32,8], index: 1, kind: input, shape index: {}]
  %s2 = inlined_call_operand.vmem [shape: f32[2,8,32], index: 2, kind: input, shape index: {}]
  %s3 = inlined_call_operand.hbm [shape: f32[2,8,32], index: 3, kind: output, shape index: {}]
  %s4 = sld [smem:[#allocation0]]
  $region22: #{tpu_custom_call.1} parent=0
    _
  %s6 = ssub.s32 1, %s4
  %s7 = scalar_select 0, %s6, %s4
  $region1: #{tpu_custom_call.1} parent=0
    #allocation2 [shape = 'u8[8192]{0}', space=vmem, size = 0x2000, scoped, tag = 'output window, operand 0, single buffered']
    #allocation3 [shape = 's32[1]{0}', space=sflag, size = 0x4, scoped, tag = 'scoped memory for tpu_custom_call.1']
    %8 = vsyncpa [#allocation3], 0
    // Predicated region
    $region2: #{tpu_custom_call.1} parent=1 // pred_check
      _
    $region3: #{tpu_custom_call.1} parent=1 // pred_check_branch
      %10 = sbr.rel (0) target = $region5
    $region4: #{tpu_custom_call.1} parent=1 // pred_region
      _
    $region5: #{tpu_custom_call.1} parent=1 // pred_fallthru
      _
    // Predicated region
    $region6: #{tpu_custom_call.1} parent=1 // pred_check
      _
    $region7: #{tpu_custom_call.1} parent=1 // pred_check_branch
      %12 = sbr.rel (0) target = $region9
    $region8: #{tpu_custom_call.1} parent=1 // pred_region
      _
    $region9: #{tpu_custom_call.1} parent=1 // pred_fallthru
      _
    // Predicated region
    $region10: #{tpu_custom_call.1} parent=1 // pred_check
      _
    $region11: #{tpu_custom_call.1} parent=1 // pred_check_branch
      %14 = sbr.rel (0) target = $region13
    $region12: #{tpu_custom_call.1} parent=1 // pred_region
      _
    $region13: #{tpu_custom_call.1} parent=1 // pred_fallthru
      _
    %v16 = vld [vmem:[%s0] sm:$0xff]
    %v17 = vld [vmem:[%s0 + $0x8] sm:$0xff]
    %v18 = vmul.f32 %v16, 0.17677669
    %v19 = vmul.f32 %v17, 0.17677669
    %v20 = vpack.c.bf16 %v18, %v18
    %v21 = vpack.c.bf16 %v19, %v19
    %v22 = vld [vmem:[%s1] sm:$0xff]
    %v23 = vld [vmem:[%s1 + $0x8] sm:$0xff]
    %v24 = vld [vmem:[%s1 + $0x10] sm:$0xff]
    %v25 = vld [vmem:[%s1 + $0x18] sm:$0xff]
    %v26 = vld [vmem:[%s1 + $0x20] sm:$0xff]
    %v27 = vld [vmem:[%s1 + $0x28] sm:$0xff]
    %v28 = vld [vmem:[%s1 + $0x30] sm:$0xff]
    %v29 = vld [vmem:[%s1 + $0x38] sm:$0xff]
    %v30 = vpack.c.bf16 %v23, %v22
    %v31 = vpack.c.bf16 %v25, %v24
    %v32 = vpack.c.bf16 %v27, %v26
    %v33 = vpack.c.bf16 %v29, %v28
    %v34 = vld [vmem:[%s2] sm:$0xff]
    %v35 = vld [vmem:[%s2 + $0x8] sm:$0xff]
    %v36 = vpack.c.bf16 %v34, %v34
    %v37 = vpack.c.bf16 %v35, %v35
    %vm38 = vcmask 261120
    %v40 = vsel %vm38, %v20, 0
    %42 = vmatprep.subr.bf16.mxu0 0
    %43 = vmatpush1.bf16.msra.mxu0 %v30
    %44 = vmatprep.subr.bf16.mxu0 0
    %45 = vmatpush1.bf16.msra.mxu0 %v31
    %46 = vmatprep.subr.bf16.mxu0 0
    %47 = vmatpush1.bf16.msra.mxu0 0
    %48 = vmatprep.subr.bf16.mxu0 0
    %49 = vmatpush1.bf16.msra.mxu0 0
    %50 = vmatprep.subr.bf16.mxu0 0
    %51 = vmatpush1.bf16.msra.mxu0 0
    %52 = vmatprep.subr.bf16.mxu0 0
    %53 = vmatpush1.bf16.msra.mxu0 0
    %54 = vmatprep.subr.bf16.mxu0 0
    %55 = vmatpush1.bf16.msra.mxu0 0
    %56 = vmatprep.subr.bf16.mxu0 0
    %57 = vmatpush1.bf16.msra.mxu0 0
    %58 = vmatprep.subr.bf16.mxu0 0
    %59 = vmatpush1.bf16.msra.mxu0 0
    %60 = vmatprep.subr.bf16.mxu0 0
    %61 = vmatpush1.bf16.msra.mxu0 0
    %62 = vmatprep.subr.bf16.mxu0 0
    %63 = vmatpush1.bf16.msra.mxu0 0
    %64 = vmatprep.subr.bf16.mxu0 0
    %65 = vmatpush1.bf16.msra.mxu0 0
    %66 = vmatprep.subr.bf16.mxu0 0
    %67 = vmatpush1.bf16.msra.mxu0 0
    %68 = vmatprep.subr.bf16.mxu0 0
    %69 = vmatpush1.bf16.msra.mxu0 0
    %70 = vmatprep.subr.bf16.mxu0 0
    %71 = vmatpush1.bf16.msra.mxu0 0
    %72 = vmatprep.subr.bf16.mxu0 0
    %73 = vmatpush1.bf16.msra.mxu0 0
    %74 = vmatprep.mubr.bf16.mxu0 0
    %75 = vmatmul.mubr.bf16.gmra.mrb[0].mxu0 %v40
    %v76 = vpop.f32.mrb[0].mxu0
    %v77 = vadd.f32 0.0, %v76
    %v78 = vpop.f32.mrb[0].mxu0
    %v79 = vpop.f32.mrb[0].mxu0
    %v80 = vpop.f32.mrb[0].mxu0
    %81 = vdwg.mxu0
    %v83 = vsel %vm38, %v21, 0
    %85 = vmatprep.subr.bf16.mxu0 0
    %86 = vmatpush1.bf16.msra.mxu0 %v32
    %87 = vmatprep.subr.bf16.mxu0 0
    %88 = vmatpush1.bf16.msra.mxu0 %v33
    %89 = vmatprep.subr.bf16.mxu0 0
    %90 = vmatpush1.bf16.msra.mxu0 0
    %91 = vmatprep.subr.bf16.mxu0 0
    %92 = vmatpush1.bf16.msra.mxu0 0
    %93 = vmatprep.subr.bf16.mxu0 0
    %94 = vmatpush1.bf16.msra.mxu0 0
    %95 = vmatprep.subr.bf16.mxu0 0
    %96 = vmatpush1.bf16.msra.mxu0 0
    %97 = vmatprep.subr.bf16.mxu0 0
    %98 = vmatpush1.bf16.msra.mxu0 0
    %99 = vmatprep.subr.bf16.mxu0 0
    %100 = vmatpush1.bf16.msra.mxu0 0
    %101 = vmatprep.subr.bf16.mxu0 0
    %102 = vmatpush1.bf16.msra.mxu0 0
    %103 = vmatprep.subr.bf16.mxu0 0
    %104 = vmatpush1.bf16.msra.mxu0 0
    %105 = vmatprep.subr.bf16.mxu0 0
    %106 = vmatpush1.bf16.msra.mxu0 0
    %107 = vmatprep.subr.bf16.mxu0 0
    %108 = vmatpush1.bf16.msra.mxu0 0
    %109 = vmatprep.subr.bf16.mxu0 0
    %110 = vmatpush1.bf16.msra.mxu0 0
    %111 = vmatprep.subr.bf16.mxu0 0
    %112 = vmatpush1.bf16.msra.mxu0 0
    %113 = vmatprep.subr.bf16.mxu0 0
    %114 = vmatpush1.bf16.msra.mxu0 0
    %115 = vmatprep.subr.bf16.mxu0 0
    %116 = vmatpush1.bf16.msra.mxu0 0
    %117 = vmatprep.mubr.bf16.mxu0 0
    %118 = vmatmul.mubr.bf16.gmra.mrb[0].mxu0 %v83
    %v119 = vpop.f32.mrb[0].mxu0
    %v120 = vadd.f32 0.0, %v119
    %v121 = vpop.f32.mrb[0].mxu0
    %v122 = vpop.f32.mrb[0].mxu0
    %v123 = vpop.f32.mrb[0].mxu0
    %124 = vdwg.mxu0
    %vm125 = vcmask 64512
    %v126 = vsel %vm125, %v77, -inf
    %127 = vmax.xlane.f32.xlu0 %v126
    %v128 = vpop.xlane.xlu0 %127
    %v129 = vsel %vm125, %v120, -inf
    %130 = vmax.xlane.f32.xlu0 %v129
    %v131 = vpop.xlane.xlu0 %130
    %v132 = vsub.f32 %v77, %v128
    %v133 = vsub.f32 %v120, %v131
    %v134 = vmul.f32 %v132, 1.442695
    %v135 = vpow.pop %v134
    %v136 = vmul.f32 %v133, 1.442695
    %v137 = vpow.pop %v136
    %v138 = vsel %vm125, %v135, 0.0
    %139 = vadd.xlane.f32.xlu0 %v138
    %v140 = vpop.xlane.xlu0 %139
    %v141 = vsel %vm125, %v137, 0.0
    %142 = vadd.xlane.f32.xlu0 %v141
    %v143 = vpop.xlane.xlu0 %142
    %v144 = vpack.c.bf16 %v135, %v135
    %v145 = vpack.c.bf16 %v137, %v137
    %v147 = vsel %vm125, %v144, 0
    %vm149 = vcmask 1043456
    %v151 = vsel %vm149, %v36, 0
    %153 = vmatprep.subr.bf16.mxu0 0
    %154 = vmatpush1.bf16.msra.mxu0 %v151
    %155 = vmatprep.subr.bf16.mxu0 0
    %156 = vmatpush1.bf16.msra.mxu0 0
    %157 = vmatprep.subr.bf16.mxu0 0
    %158 = vmatpush1.bf16.msra.mxu0 0
    %159 = vmatprep.subr.bf16.mxu0 0
    %160 = vmatpush1.bf16.msra.mxu0 0
    %161 = vmatprep.subr.bf16.mxu0 0
    %162 = vmatpush1.bf16.msra.mxu0 0
    %163 = vmatprep.subr.bf16.mxu0 0
    %164 = vmatpush1.bf16.msra.mxu0 0
    %165 = vmatprep.subr.bf16.mxu0 0
    %166 = vmatpush1.bf16.msra.mxu0 0
    %167 = vmatprep.subr.bf16.mxu0 0
    %168 = vmatpush1.bf16.msra.mxu0 0
    %169 = vmatprep.subr.bf16.mxu0 0
    %170 = vmatpush1.bf16.msra.mxu0 0
    %171 = vmatprep.subr.bf16.mxu0 0
    %172 = vmatpush1.bf16.msra.mxu0 0
    %173 = vmatprep.subr.bf16.mxu0 0
    %174 = vmatpush1.bf16.msra.mxu0 0
    %175 = vmatprep.subr.bf16.mxu0 0
    %176 = vmatpush1.bf16.msra.mxu0 0
    %177 = vmatprep.subr.bf16.mxu0 0
    %178 = vmatpush1.bf16.msra.mxu0 0
    %179 = vmatprep.subr.bf16.mxu0 0
    %180 = vmatpush1.bf16.msra.mxu0 0
    %181 = vmatprep.subr.bf16.mxu0 0
    %182 = vmatpush1.bf16.msra.mxu0 0
    %183 = vmatprep.subr.bf16.mxu0 0
    %184 = vmatpush1.bf16.msra.mxu0 0
    %185 = vmatprep.mubr.bf16.mxu0 0
    %186 = vmatmul.mubr.bf16.gmra.mrb[0].mxu0 %v147
    %v187 = vpop.f32.mrb[0].mxu0
    %v188 = vadd.f32 0.0, %v187
    %v189 = vpop.f32.mrb[0].mxu0
    %v190 = vpop.f32.mrb[0].mxu0
    %v191 = vpop.f32.mrb[0].mxu0
    %192 = vdwg.mxu0
    %v194 = vsel %vm125, %v145, 0
    %v197 = vsel %vm149, %v37, 0
    %199 = vmatprep.subr.bf16.mxu0 0
    %200 = vmatpush1.bf16.msra.mxu0 %v197
    %201 = vmatprep.subr.bf16.mxu0 0
    %202 = vmatpush1.bf16.msra.mxu0 0
    %203 = vmatprep.subr.bf16.mxu0 0
    %204 = vmatpush1.bf16.msra.mxu0 0
    %205 = vmatprep.subr.bf16.mxu0 0
    %206 = vmatpush1.bf16.msra.mxu0 0
    %207 = vmatprep.subr.bf16.mxu0 0
    %208 = vmatpush1.bf16.msra.mxu0 0
    %209 = vmatprep.subr.bf16.mxu0 0
    %210 = vmatpush1.bf16.msra.mxu0 0
    %211 = vmatprep.subr.bf16.mxu0 0
    %212 = vmatpush1.bf16.msra.mxu0 0
    %213 = vmatprep.subr.bf16.mxu0 0
    %214 = vmatpush1.bf16.msra.mxu0 0
    %215 = vmatprep.subr.bf16.mxu0 0
    %216 = vmatpush1.bf16.msra.mxu0 0
    %217 = vmatprep.subr.bf16.mxu0 0
    %218 = vmatpush1.bf16.msra.mxu0 0
    %219 = vmatprep.subr.bf16.mxu0 0
    %220 = vmatpush1.bf16.msra.mxu0 0
    %221 = vmatprep.subr.bf16.mxu0 0
    %222 = vmatpush1.bf16.msra.mxu0 0
    %223 = vmatprep.subr.bf16.mxu0 0
    %224 = vmatpush1.bf16.msra.mxu0 0
    %225 = vmatprep.subr.bf16.mxu0 0
    %226 = vmatpush1.bf16.msra.mxu0 0
    %227 = vmatprep.subr.bf16.mxu0 0
    %228 = vmatpush1.bf16.msra.mxu0 0
    %229 = vmatprep.subr.bf16.mxu0 0
    %230 = vmatpush1.bf16.msra.mxu0 0
    %231 = vmatprep.mubr.bf16.mxu0 0
    %232 = vmatmul.mubr.bf16.gmra.mrb[0].mxu0 %v194
    %v233 = vpop.f32.mrb[0].mxu0
    %v234 = vadd.f32 0.0, %v233
    %v235 = vpop.f32.mrb[0].mxu0
    %v236 = vpop.f32.mrb[0].mxu0
    %v237 = vpop.f32.mrb[0].mxu0
    %238 = vdwg.mxu0
    %v239 = vrcp.pop %v140
    %v240 = vrcp.pop %v143
    %v241 = vmul.f32 %v188, %v239
    %v242 = vmul.f32 %v234, %v240
    %243 = vst.msk [vmem:[#allocation2] sm:$0xff] %vm38, %v241
    %244 = vst.msk [vmem:[#allocation2 + $0x8] sm:$0xff] %vm38, %v242
    // Predicated region
    $region14: #{tpu_custom_call.1} parent=1 // pred_check
      _
    $region15: #{tpu_custom_call.1} parent=1 // pred_check_branch
      %246 = sbr.rel (0) target = $region17
    $region16: #{tpu_custom_call.1} parent=1 // pred_region
      %s248 = ssub.s32 256, 256
      %249 = vsyncadd [#allocation3], %s248
      %s250 = sshll.u32 [#allocation2], 4
      %s251 = int_to_ptr.vmem [resolvable:$true] %s250
      %256 = dma.vmem_to_hbm [thread:$0]  %s251, 256, %s3, [#allocation3], 128, 128, 8
    $region17: #{tpu_custom_call.1} parent=1 // pred_fallthru
      _
    // Predicated region
    $region18: #{tpu_custom_call.1} parent=1 // pred_check
      _
    $region19: #{tpu_custom_call.1} parent=1 // pred_check_branch
      %258 = sbr.rel (0) target = $region21
    $region20: #{tpu_custom_call.1} parent=1 // pred_region
      %259 = dma.done [#allocation3], 256
    $region21: #{tpu_custom_call.1} parent=1 // pred_fallthru
      _
    %260 = vsyncpa [#allocation3], 1

</llo_original>
